<compile_context>
chip_gen: v7x
topology: tpu7x:2x2x1
jax: 0.10.0
libtpu: 0.0.40
codegen_flags: <defaults>
</compile_context>

<pallas_src>
import functools

import jax
import jax.numpy as jnp
from jax import lax
from jax.experimental import pallas as pl
from jax.experimental.pallas import tpu as pltpu

_LANE = 128
_MAX_TILE_ROWS = 512       # (512, 128) f32 tile = 256 KiB per input buffer
_NUM_PARALLEL = 2          # megacore split on v7x; harmless on v5e/v6e


def _cdiv(a, b):
    return (a + b - 1) // b


def _bce_kernel(x_ref, t_ref, o_ref, acc_ref, *,
                tile_rows, blocks_per_core, n_valid, needs_mask):
    """One (tile_rows, 128) block per grid step.

    acc_ref : VMEM (tile_rows, 128) f32 running elementwise sum (per core).
    o_ref   : (1, 1, 128) per-core lane-partial sums, written on last step.
    """
    p = pl.program_id(0)
    j = pl.program_id(1)

    @pl.when(j == 0)
    def _():
        acc_ref[...] = jnp.zeros_like(acc_ref)

    # Widen to f32 in-kernel (inputs stream in their native dtype from HBM).
    x = x_ref[...].astype(jnp.float32)
    t = t_ref[...].astype(jnp.float32)

    if needs_mask:
        # Logical (unclamped) block index this step was assigned; elements at
        # global index >= n_valid (ragged tail / clamped redundant blocks) are
        # replaced with loss-neutral values x=1, t=1 -> contribution 0.
        b = p * blocks_per_core + j
        row0 = b * tile_rows
        row_iota = lax.broadcasted_iota(jnp.int32, x.shape, 0)
        lane_iota = lax.broadcasted_iota(jnp.int32, x.shape, 1)
        gidx = (row0 + row_iota) * _LANE + lane_iota
        valid = gidx < n_valid
        x = jnp.where(valid, x, 1.0)
        t = jnp.where(valid, t, 1.0)

    # PyTorch BCELoss clamps each log term at -100 (clamp before multiply so
    # 0 * (-inf) never produces NaN).
    log_x = jnp.maximum(jnp.log(x), -100.0)
    log_1mx = jnp.maximum(jnp.log(1.0 - x), -100.0)
    loss = -(t * log_x + (1.0 - t) * log_1mx)

    # Elementwise VPU accumulate; defer the expensive cross-lane/sublane
    # reduction to once per core.
    acc_ref[...] += loss

    @pl.when(j == pl.num_programs(1) - 1)
    def _():
        # Per-lane partial sums (single cross-sublane reduce), lane-dense store.
        o_ref[...] = jnp.sum(acc_ref[...], axis=0, keepdims=True).reshape(
            1, 1, _LANE)


def _bce_loss_pallas(inp, tgt):
    """Mean BCE over all elements of `inp` / `tgt` (any shape), via Pallas."""
    n_valid = int(inp.size)

    flat_x = inp.reshape(-1)
    flat_t = tgt.reshape(-1)

    # Only pad to a multiple of the lane width (<= 127 elems; usually zero).
    pad = (-flat_x.size) % _LANE
    if pad:
        flat_x = jnp.pad(flat_x, (0, pad), constant_values=1)
        flat_t = jnp.pad(flat_t, (0, pad), constant_values=1)

    rows = flat_x.size // _LANE
    x2d = flat_x.reshape(rows, _LANE)
    t2d = flat_t.reshape(rows, _LANE)

    # Biggest tile that fits the data (multiple of 8 sublanes, or the full
    # first dim for tiny inputs).
    if rows >= 8:
        tile_rows = min(_MAX_TILE_ROWS, (rows // 8) * 8)
    else:
        tile_rows = rows  # block dim equals full array dim -> allowed

    total_blocks = _cdiv(rows, tile_rows)
    num_parallel = _NUM_PARALLEL if total_blocks > 1 else 1
    blocks_per_core = _cdiv(total_blocks, num_parallel)

    # Masking only needed if there is a padded tail, a ragged last block, or
    # clamped redundant blocks on the second core.
    needs_mask = (
        rows * _LANE != n_valid
        or total_blocks * tile_rows != rows
        or num_parallel * blocks_per_core != total_blocks
    )

    def in_index_map(p, j):
        b = p * blocks_per_core + j
        # Clamp so the DMA never goes fully out of bounds; clamped (redundant)
        # blocks are zeroed out by the in-kernel mask.
        return (jnp.minimum(b, total_blocks - 1), 0)

    kernel = functools.partial(
        _bce_kernel,
        tile_rows=tile_rows,
        blocks_per_core=blocks_per_core,
        n_valid=n_valid,
        needs_mask=needs_mask,
    )

    partials = pl.pallas_call(
        kernel,
        out_shape=jax.ShapeDtypeStruct((num_parallel, 1, _LANE), jnp.float32),
        grid_spec=pltpu.PrefetchScalarGridSpec(
            num_scalar_prefetch=0,
            grid=(num_parallel, blocks_per_core),
            in_specs=[
                pl.BlockSpec((tile_rows, _LANE), in_index_map),
                pl.BlockSpec((tile_rows, _LANE), in_index_map),
            ],
            out_specs=pl.BlockSpec((1, 1, _LANE), lambda p, j: (p, 0, 0)),
            scratch_shapes=[pltpu.VMEM((tile_rows, _LANE), jnp.float32)],
        ),
        compiler_params=pltpu.CompilerParams(
            dimension_semantics=("parallel", "arbitrary"),
            vmem_limit_bytes=32 * 1024 * 1024,
        ),
    )(x2d, t2d)

    # Tiny epilogue: sum per-core / per-lane partials and take the mean.
    return jnp.sum(partials) / n_valid


class LossPallas:
    """JAX/Pallas port of the PyTorch `Loss` module (BCELoss, mean reduction)."""

    def __init__(self, config=None):
        # nn.BCELoss() has no parameters; nothing to initialize.
        self.config = config

    def __call__(self, inp, targets=None):
        if targets is not None:
            return _bce_loss_pallas(inp, targets)
        # No targets: identity passthrough, same as the PyTorch module.
        return inp


if __name__ == "__main__":
    key = jax.random.PRNGKey(0)
    k1, k2 = jax.random.split(key)

    # Small NCHW-shaped probability map + binary targets.
    B, C, H, W = 2, 4, 16, 16
    x = jax.nn.sigmoid(jax.random.normal(k1, (B, C, H, W), jnp.float32))
    t = (jax.random.uniform(k2, (B, C, H, W)) > 0.5).astype(jnp.float32)

    loss_mod = LossPallas(config=None)

    # Path 1: targets provided -> Pallas BCE kernel.
    loss = loss_mod(x, t)
    loss = jax.block_until_ready(loss)

    # Reference check (pure JAX) to make sure semantics match PyTorch BCELoss.
    ref = jnp.mean(
        -(t * jnp.maximum(jnp.log(x), -100.0)
          + (1.0 - t) * jnp.maximum(jnp.log(1.0 - x), -100.0))
    )
    assert jnp.allclose(loss, ref, rtol=1e-5, atol=1e-6), (loss, ref)

    # Also exercise a ragged / multi-block shape (non-multiple of the tile).
    k3, k4 = jax.random.split(k2)
    x2 = jax.nn.sigmoid(jax.random.normal(k3, (3, 5, 17, 13), jnp.float32))
    t2 = (jax.random.uniform(k4, (3, 5, 17, 13)) > 0.5).astype(jnp.float32)
    loss2 = jax.block_until_ready(loss_mod(x2, t2))
    ref2 = jnp.mean(
        -(t2 * jnp.maximum(jnp.log(x2), -100.0)
          + (1.0 - t2) * jnp.maximum(jnp.log(1.0 - x2), -100.0))
    )
    assert jnp.allclose(loss2, ref2, rtol=1e-5, atol=1e-6), (loss2, ref2)

    # Path 2: no targets -> identity.
    ident = jax.block_until_ready(loss_mod(x))
    assert ident.shape == x.shape

    print("KERNEL_OK")
</pallas_src>

<mosaic_0001>
module attributes {stable_mosaic.version = 11 : i64} {
  func.func @_bce_kernel(%arg0: i32, %arg1: i32, %arg2: memref<16x128xf32, #tpu.memory_space<vmem>>, %arg3: memref<16x128xf32, #tpu.memory_space<vmem>>, %arg4: memref<1x1x128xf32, #tpu.memory_space<vmem>>, %arg5: memref<16x128xf32, #tpu.memory_space<vmem>>) attributes {dimension_semantics = [#tpu.dimension_semantics<parallel>, #tpu.dimension_semantics<arbitrary>], iteration_bounds = array<i64: 1, 1>, scalar_prefetch = 0 : i64, scratch_operands = 1 : i64, tpu.core_type = #tpu.core_type<tc>, window_params = [{transform_indices = @transform_0, window_bounds = array<i64: 16, 128>}, {transform_indices = @transform_1, window_bounds = array<i64: 16, 128>}, {transform_indices = @transform_2, window_bounds = array<i64: 1, 1, 128>}]} {
    %c0_i32 = arith.constant 0 : i32
    %0 = arith.cmpi eq, %arg1, %c0_i32 : i32
    %1 = arith.extui %0 : i1 to i32
    %c0_i32_0 = arith.constant 0 : i32
    %2 = arith.cmpi ne, %1, %c0_i32_0 : i32
    scf.if %2 {
      %cst_14 = arith.constant 0.000000e+00 : f32
      %26 = vector.broadcast %cst_14 : f32 to vector<16x128xf32>
      %c0_15 = arith.constant 0 : index
      %c0_16 = arith.constant 0 : index
      %27 = vector.load %arg5[%c0_15, %c0_16] : memref<16x128xf32, #tpu.memory_space<vmem>>, vector<16x128xf32>
      tpu.vector_store %arg5[%c0_15, %c0_16], %26 {strides = array<i32>} : memref<16x128xf32, #tpu.memory_space<vmem>>, vector<16x128xf32>,
    } else {
    }
    %c0 = arith.constant 0 : index
    %c0_1 = arith.constant 0 : index
    %3 = vector.load %arg2[%c0, %c0_1] : memref<16x128xf32, #tpu.memory_space<vmem>>, vector<16x128xf32>
    %c0_2 = arith.constant 0 : index
    %c0_3 = arith.constant 0 : index
    %4 = vector.load %arg3[%c0_2, %c0_3] : memref<16x128xf32, #tpu.memory_space<vmem>>, vector<16x128xf32>
    %5 = math.log %3 : vector<16x128xf32>
    %cst = arith.constant -1.000000e+02 : f32
    %6 = vector.broadcast %cst : f32 to vector<16x128xf32>
    %7 = arith.maximumf %5, %6 : vector<16x128xf32>
    %cst_4 = arith.constant 1.000000e+00 : f32
    %8 = vector.broadcast %cst_4 : f32 to vector<16x128xf32>
    %9 = arith.subf %8, %3 : vector<16x128xf32>
    %10 = math.log %9 : vector<16x128xf32>
    %cst_5 = arith.constant -1.000000e+02 : f32
    %11 = vector.broadcast %cst_5 : f32 to vector<16x128xf32>
    %12 = arith.maximumf %10, %11 : vector<16x128xf32>
    %13 = arith.mulf %4, %7 : vector<16x128xf32>
    %cst_6 = arith.constant 1.000000e+00 : f32
    %14 = vector.broadcast %cst_6 : f32 to vector<16x128xf32>
    %15 = arith.subf %14, %4 : vector<16x128xf32>
    %16 = arith.mulf %15, %12 : vector<16x128xf32>
    %17 = arith.addf %13, %16 : vector<16x128xf32>
    %cst_7 = arith.constant 0.000000e+00 : f32
    %18 = vector.broadcast %cst_7 : f32 to vector<16x128xf32>
    %19 = arith.subf %18, %17 : vector<16x128xf32>
    %c0_8 = arith.constant 0 : index
    %c0_9 = arith.constant 0 : index
    %20 = vector.load %arg5[%c0_8, %c0_9] : memref<16x128xf32, #tpu.memory_space<vmem>>, vector<16x128xf32>
    %21 = arith.addf %20, %19 : vector<16x128xf32>
    %c0_10 = arith.constant 0 : index
    %c0_11 = arith.constant 0 : index
    %22 = vector.load %arg5[%c0_10, %c0_11] : memref<16x128xf32, #tpu.memory_space<vmem>>, vector<16x128xf32>
    tpu.vector_store %arg5[%c0_10, %c0_11], %21 {strides = array<i32>} : memref<16x128xf32, #tpu.memory_space<vmem>>, vector<16x128xf32>,
    %c0_i32_12 = arith.constant 0 : i32
    %23 = arith.cmpi eq, %arg1, %c0_i32_12 : i32
    %24 = arith.extui %23 : i1 to i32
    %c0_i32_13 = arith.constant 0 : i32
    %25 = arith.cmpi ne, %24, %c0_i32_13 : i32
    scf.if %25 {
      %c0_14 = arith.constant 0 : index
      %c0_15 = arith.constant 0 : index
      %26 = vector.load %arg5[%c0_14, %c0_15] : memref<16x128xf32, #tpu.memory_space<vmem>>, vector<16x128xf32>
      %cst_16 = arith.constant dense<0.000000e+00> : vector<128xf32>
      %27 = vector.multi_reduction <add>, %26, %cst_16 [0] : vector<16x128xf32> to vector<128xf32>
      %28 = vector.shape_cast %27 : vector<128xf32> to vector<1x128xf32>
      %29 = vector.shape_cast %28 : vector<1x128xf32> to vector<1x1x128xf32>
      %c0_17 = arith.constant 0 : index
      %c0_18 = arith.constant 0 : index
      %c0_19 = arith.constant 0 : index
      %30 = vector.load %arg4[%c0_17, %c0_18, %c0_19] : memref<1x1x128xf32, #tpu.memory_space<vmem>>, vector<1x1x128xf32>
      tpu.vector_store %arg4[%c0_17, %c0_18, %c0_19], %29 {strides = array<i32>} : memref<1x1x128xf32, #tpu.memory_space<vmem>>, vector<1x1x128xf32>,
    } else {
    }
    return
  }
  func.func @transform_0(%arg0: i32, %arg1: i32) -> (i32, i32) {
    %c1_i32 = arith.constant 1 : i32
    %0 = arith.muli %arg0, %c1_i32 : i32
    %1 = arith.addi %0, %arg1 : i32
    %c0_i32 = arith.constant 0 : i32
    %2 = arith.minsi %1, %c0_i32 : i32
    %c0_i32_0 = arith.constant 0 : i32
    %c0_i32_1 = arith.constant 0 : i32
    return %2, %c0_i32_0 : i32, i32
  }
  func.func @transform_1(%arg0: i32, %arg1: i32) -> (i32, i32) {
    %c1_i32 = arith.constant 1 : i32
    %0 = arith.muli %arg0, %c1_i32 : i32
    %1 = arith.addi %0, %arg1 : i32
    %c0_i32 = arith.constant 0 : i32
    %2 = arith.minsi %1, %c0_i32 : i32
    %c0_i32_0 = arith.constant 0 : i32
    %c0_i32_1 = arith.constant 0 : i32
    return %2, %c0_i32_0 : i32, i32
  }
  func.func @transform_2(%arg0: i32, %arg1: i32) -> (i32, i32, i32) {
    %c0_i32 = arith.constant 0 : i32
    %c0_i32_0 = arith.constant 0 : i32
    %c0_i32_1 = arith.constant 0 : i32
    return %arg0, %c0_i32, %c0_i32_0 : i32, i32, i32
  }
}

</mosaic_0001>

<llo_original>
// kernel: tpu_custom_call.1
$region0: #{tpu_custom_call.1}
  #allocation0 [shape = 'u32[]', space=smem, size = 0x4, offset = 0x4, fixed_abs, tag = 'smem constant byte address 0x4 - core index']
  #allocation1 [shape = 'u32[144,128]{1,0:T(1,128)}', space=vmem, size = 0x12000, scoped, tag = 'internal scratch']
  #allocation2 [shape = 'f32[16,128]{1,0:T(8,128)}', space=vmem, size = 0x2000, scoped, tag = 'scratch operand']
  %s0 = inlined_call_operand.hbm [shape: f32[16,128], index: 0, kind: input, shape index: {}]
  %s1 = inlined_call_operand.hbm [shape: f32[16,128], index: 1, kind: input, shape index: {}]
  %s2 = inlined_call_operand.hbm [shape: f32[1,1,128], index: 2, kind: output, shape index: {}]
  %s3 = sld [smem:[#allocation0]]
  $region34: #{tpu_custom_call.1} parent=0
    _
  %s5 = ssub.s32 1, %s3
  %s6 = scalar_select 0, %s5, %s3
  $region1: #{tpu_custom_call.1} parent=0
    #allocation3 [shape = 'u8[8192]{0}', space=vmem, size = 0x2000, scoped, tag = 'input window, operand 0, single buffered']
    #allocation4 [shape = 's32[1]{0}', space=sflag, size = 0x4, scoped, tag = 'scoped memory for tpu_custom_call.1']
    #allocation5 [shape = 's32[1]{0}', space=sflag, size = 0x4, scoped, tag = 'scoped memory for tpu_custom_call.1']
    #allocation6 [shape = 'u8[8192]{0}', space=vmem, size = 0x2000, scoped, tag = 'input window, operand 1, single buffered']
    #allocation7 [shape = 's32[1]{0}', space=sflag, size = 0x4, scoped, tag = 'scoped memory for tpu_custom_call.1']
    #allocation8 [shape = 'u8[512]{0}', space=vmem, size = 0x400, scoped, tag = 'output window, operand 0, single buffered']
    %7 = vsyncpa [#allocation4], 0
    %8 = vsyncpa [#allocation7], 0
    %9 = vsyncpa [#allocation5], 0
    // Predicated region
    $region2: #{tpu_custom_call.1} parent=1 // pred_check
      _
    $region3: #{tpu_custom_call.1} parent=1 // pred_check_branch
      %11 = sbr.rel (0) target = $region5
    $region4: #{tpu_custom_call.1} parent=1 // pred_region
      %s12 = sadd.s32 0, 0
      %p13 = scmp.lt.s32.totalorder %s12, 0
      %s14 = scalar_select %p13, %s12, 0
      %s15 = smul.u32 2, %s14
      %s17 = ssub.s32 256, 256
      %18 = vsyncadd [#allocation4], %s17
      %s19 = smul.addr %s15, 128
      %s20 = scalar_lea.hbm %s0, %s19
      %s21 = sshll.u32 [#allocation3], 4
      %s22 = int_to_ptr.vmem [resolvable:$true] %s21
      %27 = dma.hbm_to_vmem [thread:$0]  %s20, 256, %s22, [#allocation4], 128, 128, 8
    $region5: #{tpu_custom_call.1} parent=1 // pred_fallthru
      _
    // Predicated region
    $region6: #{tpu_custom_call.1} parent=1 // pred_check
      _
    $region7: #{tpu_custom_call.1} parent=1 // pred_check_branch
      %29 = sbr.rel (0) target = $region9
    $region8: #{tpu_custom_call.1} parent=1 // pred_region
      %s30 = sadd.s32 0, 0
      %p31 = scmp.lt.s32.totalorder %s30, 0
      %s32 = scalar_select %p31, %s30, 0
      %s33 = smul.u32 2, %s32
      %s35 = ssub.s32 256, 256
      %36 = vsyncadd [#allocation7], %s35
      %s37 = smul.addr %s33, 128
      %s38 = scalar_lea.hbm %s1, %s37
      %s39 = sshll.u32 [#allocation6], 4
      %s40 = int_to_ptr.vmem [resolvable:$true] %s39
      %45 = dma.hbm_to_vmem [thread:$0]  %s38, 256, %s40, [#allocation7], 128, 128, 8
    $region9: #{tpu_custom_call.1} parent=1 // pred_fallthru
      _
    // Predicated region
    $region10: #{tpu_custom_call.1} parent=1 // pred_check
      _
    $region11: #{tpu_custom_call.1} parent=1 // pred_check_branch
      %47 = sbr.rel (0) target = $region13
    $region12: #{tpu_custom_call.1} parent=1 // pred_region
      %48 = dma.done [#allocation4], 256
    $region13: #{tpu_custom_call.1} parent=1 // pred_fallthru
      _
    // Predicated region
    $region14: #{tpu_custom_call.1} parent=1 // pred_check
      _
    $region15: #{tpu_custom_call.1} parent=1 // pred_check_branch
      %50 = sbr.rel (0) target = $region17
    $region16: #{tpu_custom_call.1} parent=1 // pred_region
      %51 = dma.done [#allocation7], 256
    $region17: #{tpu_custom_call.1} parent=1 // pred_fallthru
      _
    %s52 = sadd.s32 0, 0
    %p53 = scmp.lt.s32.totalorder %s52, 0
    %s54 = scalar_select %p53, %s52, 0
    %s55 = smul.u32 2, %s54
    %s56 = sadd.s32 0, 0
    %p57 = scmp.lt.s32.totalorder %s56, 0
    %s58 = scalar_select %p57, %s56, 0
    %s59 = smul.u32 2, %s58
    %p60 = scmp.eq.s32.totalorder 0, 0
    // Predicated region
    $region18: #{tpu_custom_call.1} parent=1 // pred_check
      %p61 = pneg %p60
    $region19: #{tpu_custom_call.1} parent=1 // pred_check_branch
      %63 = sbr.rel (%p61) target = $region21
    $region20: #{tpu_custom_call.1} parent=1 // pred_region
      %64 = vst [vmem:[#allocation2] sm:$0xff] 0.0
      %65 = vst [vmem:[#allocation2 + $0x8] sm:$0xff] 0.0
    $region21: #{tpu_custom_call.1} parent=1 // pred_fallthru
      _
    %v66 = vld [vmem:[#allocation3] sm:$0xff]
    %v67 = vld [vmem:[#allocation3 + $0x8] sm:$0xff]
    %v68 = vld [vmem:[#allocation6] sm:$0xff]
    %v69 = vld [vmem:[#allocation6 + $0x8] sm:$0xff]
    %v70 = vlog2.pop %v66
    %v71 = vmul.f32 %v70, 0.6931472
    %v72 = vlog2.pop %v67
    %v73 = vmul.f32 %v72, 0.6931472
    %v74 = vmax.f32 %v71, -100.0
    %v75 = vmax.f32 %v73, -100.0
    %v76 = vsub.f32 1.0, %v66
    %v77 = vsub.f32 1.0, %v67
    %v78 = vlog2.pop %v76
    %v79 = vmul.f32 %v78, 0.6931472
    %v80 = vlog2.pop %v77
    %v81 = vmul.f32 %v80, 0.6931472
    %v82 = vmax.f32 %v79, -100.0
    %v83 = vmax.f32 %v81, -100.0
    %v84 = vmul.f32 %v68, %v74
    %v85 = vmul.f32 %v69, %v75
    %v86 = vsub.f32 1.0, %v68
    %v87 = vsub.f32 1.0, %v69
    %v88 = vmul.f32 %v86, %v82
    %v89 = vmul.f32 %v87, %v83
    %v90 = vadd.f32 %v84, %v88
    %v91 = vadd.f32 %v85, %v89
    %v92 = vsub.f32 0.0, %v90
    %v93 = vsub.f32 0.0, %v91
    %v94 = vld [vmem:[#allocation2] sm:$0xff]
    %v95 = vld [vmem:[#allocation2 + $0x8] sm:$0xff]
    %v96 = vadd.f32 %v94, %v92
    %v97 = vadd.f32 %v95, %v93
    %98 = vst [vmem:[#allocation2] sm:$0xff] %v96
    %99 = vst [vmem:[#allocation2 + $0x8] sm:$0xff] %v97
    // Predicated region
    $region22: #{tpu_custom_call.1} parent=1 // pred_check
      %p100 = pneg %p60
    $region23: #{tpu_custom_call.1} parent=1 // pred_check_branch
      %102 = sbr.rel (%p100) target = $region25
    $region24: #{tpu_custom_call.1} parent=1 // pred_region
      %v103 = vld [vmem:[#allocation2] sm:$0xff]
      %v104 = vld [vmem:[#allocation2 + $0x8] sm:$0xff]
      %v105 = vadd.f32 %v103, %v104
      %v106 = vrot.slane %v105, 4
      %v107 = vadd.f32 %v105, %v106
      %v108 = vrot.slane %v107, 2
      %v109 = vadd.f32 %v107, %v108
      %v110 = vrot.slane %v109, 1
      %v111 = vadd.f32 %v109, %v110
      %112 = vst [vmem:[#allocation8] sm:$0x1] %v111
    $region25: #{tpu_custom_call.1} parent=1 // pred_fallthru
      _
    // Predicated region
    $region26: #{tpu_custom_call.1} parent=1 // pred_check
      _
    $region27: #{tpu_custom_call.1} parent=1 // pred_check_branch
      %114 = sbr.rel (0) target = $region29
    $region28: #{tpu_custom_call.1} parent=1 // pred_region
      %s116 = ssub.s32 16, 16
      %117 = vsyncadd [#allocation5], %s116
      %s119 = sshll.u32 [#allocation8], 4
      %s120 = int_to_ptr.vmem [resolvable:$true] %s119
      %122 = dma.vmem_to_hbm [thread:$0]  %s120, 16, %s2, [#allocation5]
    $region29: #{tpu_custom_call.1} parent=1 // pred_fallthru
      _
    // Predicated region
    $region30: #{tpu_custom_call.1} parent=1 // pred_check
      _
    $region31: #{tpu_custom_call.1} parent=1 // pred_check_branch
      %124 = sbr.rel (0) target = $region33
    $region32: #{tpu_custom_call.1} parent=1 // pred_region
      %125 = dma.done [#allocation5], 16
    $region33: #{tpu_custom_call.1} parent=1 // pred_fallthru
      _
    %126 = vsyncpa [#allocation4], 1
    %127 = vsyncpa [#allocation7], 1
    %128 = vsyncpa [#allocation5], 1

</llo_original>
